<compile_context>
chip_gen: v7x
topology: tpu7x:2x2x1
jax: 0.10.0
libtpu: 0.0.40
codegen_flags: <defaults>
</compile_context>

<pallas_src>
import functools

import jax
import jax.numpy as jnp
from jax.experimental import pallas as pl
from jax.experimental.pallas import tpu as pltpu  # noqa: F401  (TPU backend)

LANE = 128


def _round_up(n, m):
    return ((n + m - 1) // m) * m


def _full_spec(shape):
    # Gridless full-array VMEM block (block shape == full array dims is legal).
    return pl.BlockSpec(shape, lambda: (0,) * len(shape))


def _fused_mlp_kernel(x_ref, w0_ref, b0_ref, ws_ref, bs_ref, o_ref, *, n_cls):
    """Fused chain: backbone Linear, then classifier Linears with ReLU between.

    x_ref  : (M, K)      bf16   input activations
    w0_ref : (K, P)      bf16   backbone weight        b0_ref : (1, P) f32
    ws_ref : (L, P, P)   bf16   stacked classifier Ws  bs_ref : (L, 1, P) f32
    o_ref  : (M, P)      f32    padded output
    All blocks are VMEM-resident; intermediates live in vregs / f32 accumulator.
    """
    # Backbone: bf16 @ bf16 -> f32 accumulator (MXU), f32 bias add (VPU).
    acc = jnp.dot(x_ref[...], w0_ref[...],
                  preferred_element_type=jnp.float32) + b0_ref[...]
    # Classifier layers: static Python loop -> fully unrolled.
    for i in range(n_cls):
        h = acc.astype(ws_ref.dtype)                 # bf16 operands for the MXU
        acc = jnp.dot(h, ws_ref[i],
                      preferred_element_type=jnp.float32) + bs_ref[i]
        if i != n_cls - 1:                           # no ReLU after last layer
            acc = jnp.maximum(acc, 0.0)              # f32 ReLU on the VPU
    o_ref[...] = acc.astype(o_ref.dtype)


def prepare_params(backbone_params, classifier_params):
    """Pad once at construction time.

    Backbone weight keeps its true K (no input padding needed); only output/N
    dims are padded.  All classifier layers are padded to one uniform (P, P)
    so they can be stacked into a single VMEM block.
    """
    out_dims = [backbone_params[0].shape[1]] + [w.shape[1] for (w, _) in classifier_params]
    P = _round_up(max(out_dims), LANE)

    w_bb, b_bb = backbone_params
    k0, n0 = w_bb.shape
    w0 = jnp.zeros((k0, P), jnp.bfloat16).at[:, :n0].set(w_bb.astype(jnp.bfloat16))
    b0 = jnp.zeros((1, P), jnp.float32).at[0, :n0].set(b_bb.astype(jnp.float32))

    ws, bs = [], []
    for (w, b) in classifier_params:
        k, n = w.shape
        wp = jnp.zeros((P, P), jnp.bfloat16).at[:k, :n].set(w.astype(jnp.bfloat16))
        bp = jnp.zeros((1, P), jnp.float32).at[0, :n].set(b.astype(jnp.float32))
        ws.append(wp)
        bs.append(bp)
    ws = jnp.stack(ws)   # (L, P, P)
    bs = jnp.stack(bs)   # (L, 1, P)

    out_dim = classifier_params[-1][0].shape[1]
    return w0, b0, ws, bs, out_dim


def make_forward(w0, b0, ws, bs, out_dim):
    """Returns a jitted forward(x) with all (padded, bf16) params closed over."""
    n_cls, P, _ = ws.shape
    K = w0.shape[0]
    kernel = functools.partial(_fused_mlp_kernel, n_cls=n_cls)

    @jax.jit
    def forward(x):
        M = x.shape[0]
        xb = x.astype(jnp.bfloat16)
        flops = 2 * M * K * P + 2 * M * n_cls * P * P
        bytes_accessed = (xb.size * 2 + w0.size * 2 + b0.size * 4
                          + ws.size * 2 + bs.size * 4 + M * P * 4)
        out = pl.pallas_call(
            kernel,
            out_shape=jax.ShapeDtypeStruct((M, P), jnp.float32),
            in_specs=[
                _full_spec((M, K)),          # x        (bf16)
                _full_spec((K, P)),          # backbone W
                _full_spec((1, P)),          # backbone b
                _full_spec((n_cls, P, P)),   # stacked classifier Ws
                _full_spec((n_cls, 1, P)),   # stacked classifier bs
            ],
            out_specs=_full_spec((M, P)),
            cost_estimate=pl.CostEstimate(
                flops=flops, transcendentals=0, bytes_accessed=bytes_accessed),
        )(xb, w0, b0, ws, bs)
        return out[:, :out_dim]             # fused into the jit, no extra dispatch

    return forward


def init_linear(key, in_dim, out_dim):
    """Deterministic PyTorch-style (uniform) init, weight stored as [in, out]."""
    kw, kb = jax.random.split(key)
    bound = 1.0 / (in_dim ** 0.5)
    w = jax.random.uniform(kw, (in_dim, out_dim), jnp.float32, -bound, bound)
    b = jax.random.uniform(kb, (out_dim,), jnp.float32, -bound, bound)
    return w, b


if __name__ == "__main__":
    # Small shapes consistent with the module:
    batch = 8
    in_dim = 64                 # raw-input feature dim fed to the backbone
    hidden_dimension = 32       # output dim of loaded_model / input of classifier
    parameter = [64, 32, 10]    # classifier layer widths (last = num classes)

    key = jax.random.PRNGKey(0)
    k_x, k_bb, *k_layers = jax.random.split(key, 2 + len(parameter))

    x = jax.random.normal(k_x, (batch, in_dim), jnp.float32)

    # TODO(synk): the real `loaded_model` is an arbitrary external nn.Module; a
    # deterministic frozen Linear encoder (in_dim -> hidden_dimension) stands in.
    backbone_params = init_linear(k_bb, in_dim, hidden_dimension)

    # Classifier head: Linear(hidden, 64) -> ReLU -> Linear(64, 32) -> ReLU -> Linear(32, 10)
    classifier_params = []
    prev = hidden_dimension
    for k, p in zip(k_layers, parameter):
        classifier_params.append(init_linear(k, prev, p))
        prev = p

    # One-time padding / bf16 conversion / stacking of all parameters.
    w0, b0, ws, bs, out_dim = prepare_params(backbone_params, classifier_params)
    forward = make_forward(w0, b0, ws, bs, out_dim)

    out = jax.block_until_ready(forward(x))
    assert out.shape == (batch, parameter[-1]), out.shape

    # Reference 1: identical numerics (bf16 operands, f32 accumulation, f32 bias).
    h = jnp.dot(x.astype(jnp.bfloat16), backbone_params[0].astype(jnp.bfloat16),
                preferred_element_type=jnp.float32) + backbone_params[1]
    for i, (w, b) in enumerate(classifier_params):
        h = jnp.dot(h.astype(jnp.bfloat16), w.astype(jnp.bfloat16),
                    preferred_element_type=jnp.float32) + b
        if i != len(classifier_params) - 1:
            h = jnp.maximum(h, 0.0)
    assert jnp.allclose(out, h, atol=2e-2, rtol=2e-2)

    # Reference 2: pure f32 forward (original-module semantics); loose tolerance
    # because the kernel intentionally uses bf16 weights/activations on the MXU.
    ref = x @ backbone_params[0] + backbone_params[1]
    for i, (w, b) in enumerate(classifier_params):
        ref = ref @ w + b
        if i != len(classifier_params) - 1:
            ref = jnp.maximum(ref, 0.0)
    assert jnp.allclose(out, ref, atol=1e-1, rtol=1e-1)

    print("KERNEL_OK")
</pallas_src>

<mosaic_0001>
module attributes {stable_mosaic.version = 11 : i64} {
  func.func @_fused_mlp_kernel(%arg0: memref<8x64xbf16, #tpu.memory_space<vmem>>, %arg1: memref<64x128xbf16, #tpu.memory_space<vmem>>, %arg2: memref<1x128xf32, #tpu.memory_space<vmem>>, %arg3: memref<3x128x128xbf16, #tpu.memory_space<vmem>>, %arg4: memref<3x1x128xf32, #tpu.memory_space<vmem>>, %arg5: memref<8x128xf32, #tpu.memory_space<vmem>>) attributes {dimension_semantics = [], scalar_prefetch = 0 : i64, scratch_operands = 0 : i64, tpu.core_type = #tpu.core_type<tc>} {
    %c0 = arith.constant 0 : index
    %c0_0 = arith.constant 0 : index
    %0 = vector.load %arg0[%c0, %c0_0] : memref<8x64xbf16, #tpu.memory_space<vmem>>, vector<8x64xbf16>
    %c0_1 = arith.constant 0 : index
    %c0_2 = arith.constant 0 : index
    %1 = vector.load %arg1[%c0_1, %c0_2] : memref<64x128xbf16, #tpu.memory_space<vmem>>, vector<64x128xbf16>
    %cst = arith.constant dense<0.000000e+00> : vector<8x128xf32>
    %2 = tpu.matmul %0, %1, %cst {dimension_numbers = #tpu.dot_dimension_numbers<[1], [0], [0], [1], [0, 0, 1, 1], [], []>} : vector<8x64xbf16>, vector<64x128xbf16>, vector<8x128xf32> -> vector<8x128xf32>
    %c0_3 = arith.constant 0 : index
    %c0_4 = arith.constant 0 : index
    %3 = vector.load %arg2[%c0_3, %c0_4] : memref<1x128xf32, #tpu.memory_space<vmem>>, vector<1x128xf32>
    %4 = vector.broadcast %3 : vector<1x128xf32> to vector<8x128xf32>
    %5 = arith.addf %2, %4 : vector<8x128xf32>
    %6 = arith.truncf %5 : vector<8x128xf32> to vector<8x128xbf16>
    %c0_5 = arith.constant 0 : index
    %c0_6 = arith.constant 0 : index
    %c0_7 = arith.constant 0 : index
    %7 = vector.load %arg3[%c0_5, %c0_6, %c0_7] : memref<3x128x128xbf16, #tpu.memory_space<vmem>>, vector<1x128x128xbf16>
    %8 = vector.shape_cast %7 : vector<1x128x128xbf16> to vector<128x128xbf16>
    %cst_8 = arith.constant dense<0.000000e+00> : vector<8x128xf32>
    %9 = tpu.matmul %6, %8, %cst_8 {dimension_numbers = #tpu.dot_dimension_numbers<[1], [0], [0], [1], [0, 0, 1, 1], [], []>} : vector<8x128xbf16>, vector<128x128xbf16>, vector<8x128xf32> -> vector<8x128xf32>
    %c0_9 = arith.constant 0 : index
    %c0_10 = arith.constant 0 : index
    %c0_11 = arith.constant 0 : index
    %10 = vector.load %arg4[%c0_9, %c0_10, %c0_11] : memref<3x1x128xf32, #tpu.memory_space<vmem>>, vector<1x1x128xf32>
    %11 = vector.shape_cast %10 : vector<1x1x128xf32> to vector<1x128xf32>
    %12 = vector.broadcast %11 : vector<1x128xf32> to vector<8x128xf32>
    %13 = arith.addf %9, %12 : vector<8x128xf32>
    %cst_12 = arith.constant 0.000000e+00 : f32
    %14 = vector.broadcast %cst_12 : f32 to vector<8x128xf32>
    %15 = arith.maximumf %13, %14 : vector<8x128xf32>
    %16 = arith.truncf %15 : vector<8x128xf32> to vector<8x128xbf16>
    %c1 = arith.constant 1 : index
    %c0_13 = arith.constant 0 : index
    %c0_14 = arith.constant 0 : index
    %17 = vector.load %arg3[%c1, %c0_13, %c0_14] : memref<3x128x128xbf16, #tpu.memory_space<vmem>>, vector<1x128x128xbf16>
    %18 = vector.shape_cast %17 : vector<1x128x128xbf16> to vector<128x128xbf16>
    %cst_15 = arith.constant dense<0.000000e+00> : vector<8x128xf32>
    %19 = tpu.matmul %16, %18, %cst_15 {dimension_numbers = #tpu.dot_dimension_numbers<[1], [0], [0], [1], [0, 0, 1, 1], [], []>} : vector<8x128xbf16>, vector<128x128xbf16>, vector<8x128xf32> -> vector<8x128xf32>
    %c1_16 = arith.constant 1 : index
    %c0_17 = arith.constant 0 : index
    %c0_18 = arith.constant 0 : index
    %20 = vector.load %arg4[%c1_16, %c0_17, %c0_18] : memref<3x1x128xf32, #tpu.memory_space<vmem>>, vector<1x1x128xf32>
    %21 = vector.shape_cast %20 : vector<1x1x128xf32> to vector<1x128xf32>
    %22 = vector.broadcast %21 : vector<1x128xf32> to vector<8x128xf32>
    %23 = arith.addf %19, %22 : vector<8x128xf32>
    %cst_19 = arith.constant 0.000000e+00 : f32
    %24 = vector.broadcast %cst_19 : f32 to vector<8x128xf32>
    %25 = arith.maximumf %23, %24 : vector<8x128xf32>
    %26 = arith.truncf %25 : vector<8x128xf32> to vector<8x128xbf16>
    %c2 = arith.constant 2 : index
    %c0_20 = arith.constant 0 : index
    %c0_21 = arith.constant 0 : index
    %27 = vector.load %arg3[%c2, %c0_20, %c0_21] : memref<3x128x128xbf16, #tpu.memory_space<vmem>>, vector<1x128x128xbf16>
    %28 = vector.shape_cast %27 : vector<1x128x128xbf16> to vector<128x128xbf16>
    %cst_22 = arith.constant dense<0.000000e+00> : vector<8x128xf32>
    %29 = tpu.matmul %26, %28, %cst_22 {dimension_numbers = #tpu.dot_dimension_numbers<[1], [0], [0], [1], [0, 0, 1, 1], [], []>} : vector<8x128xbf16>, vector<128x128xbf16>, vector<8x128xf32> -> vector<8x128xf32>
    %c2_23 = arith.constant 2 : index
    %c0_24 = arith.constant 0 : index
    %c0_25 = arith.constant 0 : index
    %30 = vector.load %arg4[%c2_23, %c0_24, %c0_25] : memref<3x1x128xf32, #tpu.memory_space<vmem>>, vector<1x1x128xf32>
    %31 = vector.shape_cast %30 : vector<1x1x128xf32> to vector<1x128xf32>
    %32 = vector.broadcast %31 : vector<1x128xf32> to vector<8x128xf32>
    %33 = arith.addf %29, %32 : vector<8x128xf32>
    %c0_26 = arith.constant 0 : index
    %c0_27 = arith.constant 0 : index
    %34 = vector.load %arg5[%c0_26, %c0_27] : memref<8x128xf32, #tpu.memory_space<vmem>>, vector<8x128xf32>
    tpu.vector_store %arg5[%c0_26, %c0_27], %33 {strides = array<i32>} : memref<8x128xf32, #tpu.memory_space<vmem>>, vector<8x128xf32>,
    return
  }
}

</mosaic_0001>

<llo_original>
// kernel: forward.1
$region0: #{forward.1}
  #allocation0 [shape = 'u32[]', space=smem, size = 0x4, offset = 0x4, fixed_abs, tag = 'smem constant byte address 0x4 - core index']
  #allocation1 [shape = 'u32[144,128]{1,0:T(1,128)}', space=vmem, size = 0x12000, scoped, tag = 'internal scratch']
  %s0 = inlined_call_operand.vmem [shape: bf16[8,64], index: 0, kind: input, shape index: {}]
  %s1 = inlined_call_operand.hbm [shape: bf16[64,128], index: 1, kind: input, shape index: {}]
  %s2 = inlined_call_operand.vmem [shape: f32[1,128], index: 2, kind: input, shape index: {}]
  %s3 = inlined_call_operand.hbm [shape: bf16[3,128,128], index: 3, kind: input, shape index: {}]
  %s4 = inlined_call_operand.vmem [shape: f32[3,1,128], index: 4, kind: input, shape index: {}]
  %s5 = inlined_call_operand.hbm [shape: f32[8,128], index: 5, kind: output, shape index: {}]
  %s6 = sld [smem:[#allocation0]]
  $region38: #{forward.1} parent=0
    _
  %s8 = ssub.s32 1, %s6
  %s9 = scalar_select 0, %s8, %s6
  $region1: #{forward.1} parent=0
    #allocation2 [shape = 'u8[16384]{0}', space=vmem, size = 0x4000, scoped, tag = 'input window, operand 1, single buffered']
    #allocation3 [shape = 's32[1]{0}', space=sflag, size = 0x4, scoped, tag = 'scoped memory for forward.1']
    #allocation4 [shape = 's32[1]{0}', space=sflag, size = 0x4, scoped, tag = 'scoped memory for forward.1']
    #allocation5 [shape = 'u8[98304]{0}', space=vmem, size = 0x18000, scoped, tag = 'input window, operand 3, single buffered']
    #allocation6 [shape = 's32[1]{0}', space=sflag, size = 0x4, scoped, tag = 'scoped memory for forward.1']
    #allocation7 [shape = 'u8[4096]{0}', space=vmem, size = 0x1000, scoped, tag = 'output window, operand 0, single buffered']
    %10 = vsyncpa [#allocation3], 0
    %11 = vsyncpa [#allocation6], 0
    %12 = vsyncpa [#allocation4], 0
    // Predicated region
    $region2: #{forward.1} parent=1 // pred_check
      _
    $region3: #{forward.1} parent=1 // pred_check_branch
      %14 = sbr.rel (0) target = $region5
    $region4: #{forward.1} parent=1 // pred_region
      _
    $region5: #{forward.1} parent=1 // pred_fallthru
      _
    // Predicated region
    $region6: #{forward.1} parent=1 // pred_check
      _
    $region7: #{forward.1} parent=1 // pred_check_branch
      %16 = sbr.rel (0) target = $region9
    $region8: #{forward.1} parent=1 // pred_region
      %s18 = ssub.s32 512, 512
      %19 = vsyncadd [#allocation3], %s18
      %s20 = sshll.u32 [#allocation2], 4
      %s21 = int_to_ptr.vmem [resolvable:$true] %s20
      %26 = dma.hbm_to_vmem [thread:$0]  %s1, 512, %s21, [#allocation3], 64, 64, 4
    $region9: #{forward.1} parent=1 // pred_fallthru
      _
    // Predicated region
    $region10: #{forward.1} parent=1 // pred_check
      _
    $region11: #{forward.1} parent=1 // pred_check_branch
      %28 = sbr.rel (0) target = $region13
    $region12: #{forward.1} parent=1 // pred_region
      _
    $region13: #{forward.1} parent=1 // pred_fallthru
      _
    // Predicated region
    $region14: #{forward.1} parent=1 // pred_check
      _
    $region15: #{forward.1} parent=1 // pred_check_branch
      %30 = sbr.rel (0) target = $region17
    $region16: #{forward.1} parent=1 // pred_region
      %s32 = ssub.s32 3072, 3072
      %33 = vsyncadd [#allocation6], %s32
      %s34 = sshll.u32 [#allocation5], 4
      %s35 = int_to_ptr.vmem [resolvable:$true] %s34
      %40 = dma.hbm_to_vmem [thread:$0]  %s3, 3072, %s35, [#allocation6], 64, 64, 4
    $region17: #{forward.1} parent=1 // pred_fallthru
      _
    // Predicated region
    $region18: #{forward.1} parent=1 // pred_check
      _
    $region19: #{forward.1} parent=1 // pred_check_branch
      %42 = sbr.rel (0) target = $region21
    $region20: #{forward.1} parent=1 // pred_region
      _
    $region21: #{forward.1} parent=1 // pred_fallthru
      _
    // Predicated region
    $region22: #{forward.1} parent=1 // pred_check
      _
    $region23: #{forward.1} parent=1 // pred_check_branch
      %44 = sbr.rel (0) target = $region25
    $region24: #{forward.1} parent=1 // pred_region
      %45 = dma.done [#allocation3], 512
    $region25: #{forward.1} parent=1 // pred_fallthru
      _
    // Predicated region
    $region26: #{forward.1} parent=1 // pred_check
      _
    $region27: #{forward.1} parent=1 // pred_check_branch
      %47 = sbr.rel (0) target = $region29
    $region28: #{forward.1} parent=1 // pred_region
      %48 = dma.done [#allocation6], 3072
    $region29: #{forward.1} parent=1 // pred_fallthru
      _
    %v50 = vld [vmem:[%s0] sm:$0xf]
    %v51 = vld [vmem:[#allocation2] sm:$0xf]
    %v52 = vld [vmem:[#allocation2 + $0x4] sm:$0xf]
    %v53 = vld [vmem:[#allocation2 + $0x8] sm:$0xf]
    %v54 = vld [vmem:[#allocation2 + $0xc] sm:$0xf]
    %v55 = vld [vmem:[#allocation2 + $0x10] sm:$0xf]
    %v56 = vld [vmem:[#allocation2 + $0x14] sm:$0xf]
    %v57 = vld [vmem:[#allocation2 + $0x18] sm:$0xf]
    %v58 = vld [vmem:[#allocation2 + $0x1c] sm:$0xf]
    %v59 = vld [vmem:[%s2] sm:$0x1]
    %v61 = vlaneseq
    %v62 = vshrl.u32 %v61, 7
    %v63 = vsub.s32 0, %v62
    %v64 = vrot.slane %v59, %v63
    %v74 = vunpack.c.l.b16 %v51
    %v75 = vunpack.c.l.b16 %v52
    %v76 = vunpack.c.l.b16 %v53
    %v77 = vunpack.c.l.b16 %v54
    %v78 = vunpack.c.l.b16 %v55
    %v79 = vunpack.c.l.b16 %v56
    %v80 = vunpack.c.l.b16 %v57
    %v81 = vunpack.c.l.b16 %v58
    %v82 = vpack.c.b16 %v75, %v74
    %v83 = vpack.c.b16 %v77, %v76
    %v84 = vpack.c.b16 %v79, %v78
    %v85 = vpack.c.b16 %v81, %v80
    %vm90 = vcmask 523264
    %v92 = vsel %vm90, %v50, 0
    %94 = vmatprep.subr.bf16.mxu0 0
    %95 = vmatpush1.bf16.msra.mxu0 %v82
    %96 = vmatprep.subr.bf16.mxu0 0
    %97 = vmatpush1.bf16.msra.mxu0 %v83
    %98 = vmatprep.subr.bf16.mxu0 0
    %99 = vmatpush1.bf16.msra.mxu0 %v84
    %100 = vmatprep.subr.bf16.mxu0 0
    %101 = vmatpush1.bf16.msra.mxu0 %v85
    %102 = vmatprep.subr.bf16.mxu0 0
    %103 = vmatpush1.bf16.msra.mxu0 0
    %104 = vmatprep.subr.bf16.mxu0 0
    %105 = vmatpush1.bf16.msra.mxu0 0
    %106 = vmatprep.subr.bf16.mxu0 0
    %107 = vmatpush1.bf16.msra.mxu0 0
    %108 = vmatprep.subr.bf16.mxu0 0
    %109 = vmatpush1.bf16.msra.mxu0 0
    %110 = vmatprep.subr.bf16.mxu0 0
    %111 = vmatpush1.bf16.msra.mxu0 0
    %112 = vmatprep.subr.bf16.mxu0 0
    %113 = vmatpush1.bf16.msra.mxu0 0
    %114 = vmatprep.subr.bf16.mxu0 0
    %115 = vmatpush1.bf16.msra.mxu0 0
    %116 = vmatprep.subr.bf16.mxu0 0
    %117 = vmatpush1.bf16.msra.mxu0 0
    %118 = vmatprep.subr.bf16.mxu0 0
    %119 = vmatpush1.bf16.msra.mxu0 0
    %120 = vmatprep.subr.bf16.mxu0 0
    %121 = vmatpush1.bf16.msra.mxu0 0
    %122 = vmatprep.subr.bf16.mxu0 0
    %123 = vmatpush1.bf16.msra.mxu0 0
    %124 = vmatprep.subr.bf16.mxu0 0
    %125 = vmatpush1.bf16.msra.mxu0 0
    %126 = vmatprep.mubr.bf16.mxu0 0
    %127 = vmatmul.mubr.bf16.gmra.mrb[0].mxu0 %v92
    %v128 = vpop.f32.mrb[0].mxu0
    %v129 = vadd.f32 %v64, %v128
    %v130 = vpop.f32.mrb[0].mxu0
    %v131 = vpop.f32.mrb[0].mxu0
    %v132 = vpop.f32.mrb[0].mxu0
    %133 = vdwg.mxu0
    %v134 = vpack.c.bf16 %v129, %v129
    %v135 = vld [vmem:[#allocation5] sm:$0xf]
    %v136 = vld [vmem:[#allocation5 + $0x4] sm:$0xf]
    %v137 = vld [vmem:[#allocation5 + $0x8] sm:$0xf]
    %v138 = vld [vmem:[#allocation5 + $0xc] sm:$0xf]
    %v139 = vld [vmem:[#allocation5 + $0x10] sm:$0xf]
    %v140 = vld [vmem:[#allocation5 + $0x14] sm:$0xf]
    %v141 = vld [vmem:[#allocation5 + $0x18] sm:$0xf]
    %v142 = vld [vmem:[#allocation5 + $0x1c] sm:$0xf]
    %v143 = vld [vmem:[#allocation5 + $0x20] sm:$0xf]
    %v144 = vld [vmem:[#allocation5 + $0x24] sm:$0xf]
    %v145 = vld [vmem:[#allocation5 + $0x28] sm:$0xf]
    %v146 = vld [vmem:[#allocation5 + $0x2c] sm:$0xf]
    %v147 = vld [vmem:[#allocation5 + $0x30] sm:$0xf]
    %v148 = vld [vmem:[#allocation5 + $0x34] sm:$0xf]
    %v149 = vld [vmem:[#allocation5 + $0x38] sm:$0xf]
    %v150 = vld [vmem:[#allocation5 + $0x3c] sm:$0xf]
    %v151 = vld [vmem:[%s4] sm:$0x1]
    %v153 = vlaneseq
    %v154 = vshrl.u32 %v153, 7
    %v155 = vsub.s32 0, %v154
    %v156 = vrot.slane %v151, %v155
    %v174 = vunpack.c.l.b16 %v135
    %v175 = vunpack.c.l.b16 %v136
    %v176 = vunpack.c.l.b16 %v137
    %v177 = vunpack.c.l.b16 %v138
    %v178 = vunpack.c.l.b16 %v139
    %v179 = vunpack.c.l.b16 %v140
    %v180 = vunpack.c.l.b16 %v141
    %v181 = vunpack.c.l.b16 %v142
    %v182 = vunpack.c.l.b16 %v143
    %v183 = vunpack.c.l.b16 %v144
    %v184 = vunpack.c.l.b16 %v145
    %v185 = vunpack.c.l.b16 %v146
    %v186 = vunpack.c.l.b16 %v147
    %v187 = vunpack.c.l.b16 %v148
    %v188 = vunpack.c.l.b16 %v149
    %v189 = vunpack.c.l.b16 %v150
    %v190 = vpack.c.b16 %v175, %v174
    %v191 = vpack.c.b16 %v177, %v176
    %v192 = vpack.c.b16 %v179, %v178
    %v193 = vpack.c.b16 %v181, %v180
    %v194 = vpack.c.b16 %v183, %v182
    %v195 = vpack.c.b16 %v185, %v184
    %v196 = vpack.c.b16 %v187, %v186
    %v197 = vpack.c.b16 %v189, %v188
    %206 = vmatprep.subr.bf16.mxu0 0
    %207 = vmatpush1.bf16.msra.mxu0 %v190
    %208 = vmatprep.subr.bf16.mxu0 0
    %209 = vmatpush1.bf16.msra.mxu0 %v191
    %210 = vmatprep.subr.bf16.mxu0 0
    %211 = vmatpush1.bf16.msra.mxu0 %v192
    %212 = vmatprep.subr.bf16.mxu0 0
    %213 = vmatpush1.bf16.msra.mxu0 %v193
    %214 = vmatprep.subr.bf16.mxu0 0
    %215 = vmatpush1.bf16.msra.mxu0 %v194
    %216 = vmatprep.subr.bf16.mxu0 0
    %217 = vmatpush1.bf16.msra.mxu0 %v195
    %218 = vmatprep.subr.bf16.mxu0 0
    %219 = vmatpush1.bf16.msra.mxu0 %v196
    %220 = vmatprep.subr.bf16.mxu0 0
    %221 = vmatpush1.bf16.msra.mxu0 %v197
    %222 = vmatprep.subr.bf16.mxu0 0
    %223 = vmatpush1.bf16.msra.mxu0 0
    %224 = vmatprep.subr.bf16.mxu0 0
    %225 = vmatpush1.bf16.msra.mxu0 0
    %226 = vmatprep.subr.bf16.mxu0 0
    %227 = vmatpush1.bf16.msra.mxu0 0
    %228 = vmatprep.subr.bf16.mxu0 0
    %229 = vmatpush1.bf16.msra.mxu0 0
    %230 = vmatprep.subr.bf16.mxu0 0
    %231 = vmatpush1.bf16.msra.mxu0 0
    %232 = vmatprep.subr.bf16.mxu0 0
    %233 = vmatpush1.bf16.msra.mxu0 0
    %234 = vmatprep.subr.bf16.mxu0 0
    %235 = vmatpush1.bf16.msra.mxu0 0
    %236 = vmatprep.subr.bf16.mxu0 0
    %237 = vmatpush1.bf16.msra.mxu0 0
    %238 = vmatprep.mubr.bf16.mxu0 0
    %239 = vmatmul.mubr.bf16.gmra.mrb[0].mxu0 %v134
    %v240 = vpop.f32.mrb[0].mxu0
    %v241 = vadd.f32 %v156, %v240
    %v242 = vpop.f32.mrb[0].mxu0
    %v243 = vpop.f32.mrb[0].mxu0
    %v244 = vpop.f32.mrb[0].mxu0
    %245 = vdwg.mxu0
    %v246 = vmax.f32 %v241, 0.0
    %v247 = vpack.c.bf16 %v246, %v246
    %s248 = scalar_lea.vmem [#allocation5], 64
    %v249 = vld [vmem:[%s248] sm:$0xf]
    %v250 = vld [vmem:[%s248 + $0x4] sm:$0xf]
    %v251 = vld [vmem:[%s248 + $0x8] sm:$0xf]
    %v252 = vld [vmem:[%s248 + $0xc] sm:$0xf]
    %v253 = vld [vmem:[%s248 + $0x10] sm:$0xf]
    %v254 = vld [vmem:[%s248 + $0x14] sm:$0xf]
    %v255 = vld [vmem:[%s248 + $0x18] sm:$0xf]
    %v256 = vld [vmem:[%s248 + $0x1c] sm:$0xf]
    %v257 = vld [vmem:[%s248 + $0x20] sm:$0xf]
    %v258 = vld [vmem:[%s248 + $0x24] sm:$0xf]
    %v259 = vld [vmem:[%s248 + $0x28] sm:$0xf]
    %v260 = vld [vmem:[%s248 + $0x2c] sm:$0xf]
    %v261 = vld [vmem:[%s248 + $0x30] sm:$0xf]
    %v262 = vld [vmem:[%s248 + $0x34] sm:$0xf]
    %v263 = vld [vmem:[%s248 + $0x38] sm:$0xf]
    %v264 = vld [vmem:[%s248 + $0x3c] sm:$0xf]
    %s265 = scalar_lea.vmem %s4, 1
    %v266 = vld [vmem:[%s265] sm:$0x1]
    %v268 = vlaneseq
    %v269 = vshrl.u32 %v268, 7
    %v270 = vsub.s32 0, %v269
    %v271 = vrot.slane %v266, %v270
    %v289 = vunpack.c.l.b16 %v249
    %v290 = vunpack.c.l.b16 %v250
    %v291 = vunpack.c.l.b16 %v251
    %v292 = vunpack.c.l.b16 %v252
    %v293 = vunpack.c.l.b16 %v253
    %v294 = vunpack.c.l.b16 %v254
    %v295 = vunpack.c.l.b16 %v255
    %v296 = vunpack.c.l.b16 %v256
    %v297 = vunpack.c.l.b16 %v257
    %v298 = vunpack.c.l.b16 %v258
    %v299 = vunpack.c.l.b16 %v259
    %v300 = vunpack.c.l.b16 %v260
    %v301 = vunpack.c.l.b16 %v261
    %v302 = vunpack.c.l.b16 %v262
    %v303 = vunpack.c.l.b16 %v263
    %v304 = vunpack.c.l.b16 %v264
    %v305 = vpack.c.b16 %v290, %v289
    %v306 = vpack.c.b16 %v292, %v291
    %v307 = vpack.c.b16 %v294, %v293
    %v308 = vpack.c.b16 %v296, %v295
    %v309 = vpack.c.b16 %v298, %v297
    %v310 = vpack.c.b16 %v300, %v299
    %v311 = vpack.c.b16 %v302, %v301
    %v312 = vpack.c.b16 %v304, %v303
    %321 = vmatprep.subr.bf16.mxu0 0
    %322 = vmatpush1.bf16.msra.mxu0 %v305
    %323 = vmatprep.subr.bf16.mxu0 0
    %324 = vmatpush1.bf16.msra.mxu0 %v306
    %325 = vmatprep.subr.bf16.mxu0 0
    %326 = vmatpush1.bf16.msra.mxu0 %v307
    %327 = vmatprep.subr.bf16.mxu0 0
    %328 = vmatpush1.bf16.msra.mxu0 %v308
    %329 = vmatprep.subr.bf16.mxu0 0
    %330 = vmatpush1.bf16.msra.mxu0 %v309
    %331 = vmatprep.subr.bf16.mxu0 0
    %332 = vmatpush1.bf16.msra.mxu0 %v310
    %333 = vmatprep.subr.bf16.mxu0 0
    %334 = vmatpush1.bf16.msra.mxu0 %v311
    %335 = vmatprep.subr.bf16.mxu0 0
    %336 = vmatpush1.bf16.msra.mxu0 %v312
    %337 = vmatprep.subr.bf16.mxu0 0
    %338 = vmatpush1.bf16.msra.mxu0 0
    %339 = vmatprep.subr.bf16.mxu0 0
    %340 = vmatpush1.bf16.msra.mxu0 0
    %341 = vmatprep.subr.bf16.mxu0 0
    %342 = vmatpush1.bf16.msra.mxu0 0
    %343 = vmatprep.subr.bf16.mxu0 0
    %344 = vmatpush1.bf16.msra.mxu0 0
    %345 = vmatprep.subr.bf16.mxu0 0
    %346 = vmatpush1.bf16.msra.mxu0 0
    %347 = vmatprep.subr.bf16.mxu0 0
    %348 = vmatpush1.bf16.msra.mxu0 0
    %349 = vmatprep.subr.bf16.mxu0 0
    %350 = vmatpush1.bf16.msra.mxu0 0
    %351 = vmatprep.subr.bf16.mxu0 0
    %352 = vmatpush1.bf16.msra.mxu0 0
    %353 = vmatprep.mubr.bf16.mxu0 0
    %354 = vmatmul.mubr.bf16.gmra.mrb[0].mxu0 %v247
    %v355 = vpop.f32.mrb[0].mxu0
    %v356 = vadd.f32 %v271, %v355
    %v357 = vpop.f32.mrb[0].mxu0
    %v358 = vpop.f32.mrb[0].mxu0
    %v359 = vpop.f32.mrb[0].mxu0
    %360 = vdwg.mxu0
    %v361 = vmax.f32 %v356, 0.0
    %v362 = vpack.c.bf16 %v361, %v361
    %s363 = scalar_lea.vmem [#allocation5], 128
    %v364 = vld [vmem:[%s363] sm:$0xf]
    %v365 = vld [vmem:[%s363 + $0x4] sm:$0xf]
    %v366 = vld [vmem:[%s363 + $0x8] sm:$0xf]
    %v367 = vld [vmem:[%s363 + $0xc] sm:$0xf]
    %v368 = vld [vmem:[%s363 + $0x10] sm:$0xf]
    %v369 = vld [vmem:[%s363 + $0x14] sm:$0xf]
    %v370 = vld [vmem:[%s363 + $0x18] sm:$0xf]
    %v371 = vld [vmem:[%s363 + $0x1c] sm:$0xf]
    %v372 = vld [vmem:[%s363 + $0x20] sm:$0xf]
    %v373 = vld [vmem:[%s363 + $0x24] sm:$0xf]
    %v374 = vld [vmem:[%s363 + $0x28] sm:$0xf]
    %v375 = vld [vmem:[%s363 + $0x2c] sm:$0xf]
    %v376 = vld [vmem:[%s363 + $0x30] sm:$0xf]
    %v377 = vld [vmem:[%s363 + $0x34] sm:$0xf]
    %v378 = vld [vmem:[%s363 + $0x38] sm:$0xf]
    %v379 = vld [vmem:[%s363 + $0x3c] sm:$0xf]
    %s380 = scalar_lea.vmem %s4, 2
    %v381 = vld [vmem:[%s380] sm:$0x1]
    %v383 = vlaneseq
    %v384 = vshrl.u32 %v383, 7
    %v385 = vsub.s32 0, %v384
    %v386 = vrot.slane %v381, %v385
    %v404 = vunpack.c.l.b16 %v364
    %v405 = vunpack.c.l.b16 %v365
    %v406 = vunpack.c.l.b16 %v366
    %v407 = vunpack.c.l.b16 %v367
    %v408 = vunpack.c.l.b16 %v368
    %v409 = vunpack.c.l.b16 %v369
    %v410 = vunpack.c.l.b16 %v370
    %v411 = vunpack.c.l.b16 %v371
    %v412 = vunpack.c.l.b16 %v372
    %v413 = vunpack.c.l.b16 %v373
    %v414 = vunpack.c.l.b16 %v374
    %v415 = vunpack.c.l.b16 %v375
    %v416 = vunpack.c.l.b16 %v376
    %v417 = vunpack.c.l.b16 %v377
    %v418 = vunpack.c.l.b16 %v378
    %v419 = vunpack.c.l.b16 %v379
    %v420 = vpack.c.b16 %v405, %v404
    %v421 = vpack.c.b16 %v407, %v406
    %v422 = vpack.c.b16 %v409, %v408
    %v423 = vpack.c.b16 %v411, %v410
    %v424 = vpack.c.b16 %v413, %v412
    %v425 = vpack.c.b16 %v415, %v414
    %v426 = vpack.c.b16 %v417, %v416
    %v427 = vpack.c.b16 %v419, %v418
    %436 = vmatprep.subr.bf16.mxu0 0
    %437 = vmatpush1.bf16.msra.mxu0 %v420
    %438 = vmatprep.subr.bf16.mxu0 0
    %439 = vmatpush1.bf16.msra.mxu0 %v421
    %440 = vmatprep.subr.bf16.mxu0 0
    %441 = vmatpush1.bf16.msra.mxu0 %v422
    %442 = vmatprep.subr.bf16.mxu0 0
    %443 = vmatpush1.bf16.msra.mxu0 %v423
    %444 = vmatprep.subr.bf16.mxu0 0
    %445 = vmatpush1.bf16.msra.mxu0 %v424
    %446 = vmatprep.subr.bf16.mxu0 0
    %447 = vmatpush1.bf16.msra.mxu0 %v425
    %448 = vmatprep.subr.bf16.mxu0 0
    %449 = vmatpush1.bf16.msra.mxu0 %v426
    %450 = vmatprep.subr.bf16.mxu0 0
    %451 = vmatpush1.bf16.msra.mxu0 %v427
    %452 = vmatprep.subr.bf16.mxu0 0
    %453 = vmatpush1.bf16.msra.mxu0 0
    %454 = vmatprep.subr.bf16.mxu0 0
    %455 = vmatpush1.bf16.msra.mxu0 0
    %456 = vmatprep.subr.bf16.mxu0 0
    %457 = vmatpush1.bf16.msra.mxu0 0
    %458 = vmatprep.subr.bf16.mxu0 0
    %459 = vmatpush1.bf16.msra.mxu0 0
    %460 = vmatprep.subr.bf16.mxu0 0
    %461 = vmatpush1.bf16.msra.mxu0 0
    %462 = vmatprep.subr.bf16.mxu0 0
    %463 = vmatpush1.bf16.msra.mxu0 0
    %464 = vmatprep.subr.bf16.mxu0 0
    %465 = vmatpush1.bf16.msra.mxu0 0
    %466 = vmatprep.subr.bf16.mxu0 0
    %467 = vmatpush1.bf16.msra.mxu0 0
    %468 = vmatprep.mubr.bf16.mxu0 0
    %469 = vmatmul.mubr.bf16.gmra.mrb[0].mxu0 %v362
    %v470 = vpop.f32.mrb[0].mxu0
    %v471 = vadd.f32 %v386, %v470
    %v472 = vpop.f32.mrb[0].mxu0
    %v473 = vpop.f32.mrb[0].mxu0
    %v474 = vpop.f32.mrb[0].mxu0
    %475 = vdwg.mxu0
    %476 = vst [vmem:[#allocation7] sm:$0xff] %v471
    // Predicated region
    $region30: #{forward.1} parent=1 // pred_check
      _
    $region31: #{forward.1} parent=1 // pred_check_branch
      %478 = sbr.rel (0) target = $region33
    $region32: #{forward.1} parent=1 // pred_region
      %s480 = ssub.s32 128, 128
      %481 = vsyncadd [#allocation4], %s480
      %s483 = sshll.u32 [#allocation7], 4
      %s484 = int_to_ptr.vmem [resolvable:$true] %s483
      %486 = dma.vmem_to_hbm [thread:$0]  %s484, 128, %s5, [#allocation4]
    $region33: #{forward.1} parent=1 // pred_fallthru
      _
    // Predicated region
    $region34: #{forward.1} parent=1 // pred_check
      _
    $region35: #{forward.1} parent=1 // pred_check_branch
      %488 = sbr.rel (0) target = $region37
    $region36: #{forward.1} parent=1 // pred_region
      %489 = dma.done [#allocation4], 128
    $region37: #{forward.1} parent=1 // pred_fallthru
      _
    %490 = vsyncpa [#allocation3], 1
    %491 = vsyncpa [#allocation6], 1
    %492 = vsyncpa [#allocation4], 1

</llo_original>
